<compile_context>
chip_gen: v5e
topology: v5e:2x2
jax: 0.10.0
libtpu: 0.0.40
codegen_flags: <defaults>
</compile_context>

<pallas_src>
import functools

import jax
import jax.numpy as jnp
from jax.experimental import pallas as pl
from jax.experimental.pallas import tpu as pltpu

_LANES = 128
_ACC_ROWS = 8                          # sublanes of the lane-resident accumulator
_ROW_ALIGN = 32                        # row alignment safe for f32/bf16/int8/fp8
_MAX_BLOCK_BYTES = 8 * 1024 * 1024     # per-input, per-pipeline-buffer cap (v7x-tuned)
_CHUNK_TARGET_BYTES = 512 * 1024       # live VMEM temporaries per inner chunk
_MAX_CHUNK_ROWS = 512


def _round_up(x: int, m: int) -> int:
    return ((x + m - 1) // m) * m


@functools.lru_cache(maxsize=None)
def _vmem_capacity_bytes() -> int:
    try:
        info = pltpu.get_tpu_info()
        cap = int(getattr(info, "vmem_capacity_bytes", 0) or 0)
        if cap > 0:
            return cap
    except Exception:
        pass
    return 64 * 1024 * 1024  # conservative default (v7x per-TensorCore VMEM)


def _make_sse_kernel(rows_valid, tile_rows, chunk_rows, inner, cols, needs_mask):
    """SSE partial-accumulation kernel over (tile_rows, cols) input blocks.

    Accumulates a per-shard (8, cols) lane-resident partial into the output
    block (resident in VMEM across the inner reduction axis).  The block is
    streamed in `chunk_rows`-row chunks so only O(chunk) temporaries are ever
    live in VMEM, regardless of block size.
    """
    num_chunks = tile_rows // chunk_rows
    assert tile_rows == num_chunks * chunk_rows
    assert chunk_rows % _ACC_ROWS == 0

    def _partial(pred, tgt, row0):
        d = pred.astype(jnp.float32) - tgt.astype(jnp.float32)
        sq = d * d
        if needs_mask:
            rows = row0 + jax.lax.broadcasted_iota(jnp.int32, sq.shape, 0)
            sq = jnp.where(rows < rows_valid, sq, 0.0)
        # Fold (chunk_rows, cols) -> (8, cols) with pure VPU adds; the
        # cross-lane reduction to a scalar happens once in the wrapper.
        return sq.reshape(-1, _ACC_ROWS, cols).sum(axis=0)

    def kernel(pred_ref, tgt_ref, acc_ref):
        s = pl.program_id(0)
        k = pl.program_id(1)

        @pl.when(k == 0)
        def _init():
            acc_ref[...] = jnp.zeros_like(acc_ref)

        # Unclamped global row offset of this block.  (The index_map clamps
        # the DMA to stay in bounds; masking uses the *unclamped* offset so
        # clamped-duplicate / out-of-range rows contribute exactly zero.)
        block_row0 = (s * inner + k) * tile_rows

        if num_chunks == 1:
            acc_ref[...] += _partial(pred_ref[...], tgt_ref[...], block_row0)
        else:
            def chunk_body(c, acc):
                r0 = pl.multiple_of(c * chunk_rows, chunk_rows)
                pred = pred_ref[pl.ds(r0, chunk_rows), :]
                tgt = tgt_ref[pl.ds(r0, chunk_rows), :]
                return acc + _partial(pred, tgt, block_row0 + c * chunk_rows)

            acc_ref[...] += jax.lax.fori_loop(
                0, num_chunks, chunk_body,
                jnp.zeros((_ACC_ROWS, cols), jnp.float32))

    return kernel


def _pallas_sse_2d(pred2d, tgt2d):
    """Sum of squared errors over identically shaped 2-D arrays (any cols)."""
    rows, cols = pred2d.shape
    assert tgt2d.shape == (rows, cols)

    itemsizes = (jnp.dtype(pred2d.dtype).itemsize,
                 jnp.dtype(tgt2d.dtype).itemsize)
    cols_padded = _round_up(cols, _LANES)
    row_bytes = cols_padded * max(itemsizes)       # VMEM bytes per row, per input

    vmem_cap = _vmem_capacity_bytes()
    block_cap = min(_MAX_BLOCK_BYTES, vmem_cap // 8)  # per input per pipeline buffer

    # Rows streamed per inner chunk (bounds live VMEM temporaries).
    chunk_rows = min(
        _MAX_CHUNK_ROWS,
        max(_ROW_ALIGN,
            (_CHUNK_TARGET_BYTES // row_bytes) // _ROW_ALIGN * _ROW_ALIGN))

    if rows <= chunk_rows:
        # Single small block covering the full (row-padded by caller) array.
        assert rows % _ACC_ROWS == 0
        tile_rows = chunk_rows = rows
    else:
        cap_rows = max(chunk_rows,
                       (block_cap // row_bytes) // chunk_rows * chunk_rows)
        tile_rows = min(cap_rows, (rows // chunk_rows) * chunk_rows)

    blocks_total = pl.cdiv(rows, tile_rows)
    # TODO(synk): derive the shard count from the real TensorCore count and
    # verify (xprof) that "parallel" splits across cores on v7x; otherwise
    # switch this axis to pltpu.CORE_PARALLEL / pl.core_map.
    num_shards = 2 if blocks_total >= 2 else 1
    inner = pl.cdiv(blocks_total, num_shards)
    needs_mask = (num_shards * inner * tile_rows) != rows

    kernel = _make_sse_kernel(rows, tile_rows, chunk_rows, inner, cols,
                              needs_mask)

    def in_map(s, k):
        # Clamp so no DMA window starts past the array end; duplicated blocks
        # are masked to zero inside the kernel.
        return (jnp.minimum(s * inner + k, blocks_total - 1), 0)

    pipeline_bytes = 2 * tile_rows * cols_padded * sum(itemsizes)
    vmem_limit = int(min(vmem_cap,
                         max(32 * 1024 * 1024,
                             pipeline_bytes + 8 * 1024 * 1024)))

    cost = pl.CostEstimate(
        flops=3 * rows * cols,
        transcendentals=0,
        bytes_accessed=rows * cols * sum(itemsizes)
        + num_shards * _ACC_ROWS * cols * 4,
    )

    partials = pl.pallas_call(
        kernel,
        out_shape=jax.ShapeDtypeStruct((num_shards * _ACC_ROWS, cols),
                                       jnp.float32),
        grid_spec=pltpu.PrefetchScalarGridSpec(
            num_scalar_prefetch=0,
            grid=(num_shards, inner),
            in_specs=[pl.BlockSpec((tile_rows, cols), in_map),
                      pl.BlockSpec((tile_rows, cols), in_map)],
            out_specs=pl.BlockSpec((_ACC_ROWS, cols), lambda s, k: (s, 0)),
        ),
        compiler_params=pltpu.CompilerParams(
            dimension_semantics=("parallel", "arbitrary"),
            vmem_limit_bytes=vmem_limit,
        ),
        cost_estimate=cost,
    )(pred2d, tgt2d)

    # Tiny cross-lane epilogue reduction; fused by XLA under jit.
    return jnp.sum(partials, dtype=jnp.float32)


def _as_2d_views(targets, outputs):
    """Pick a 2-D (rows, cols) view of both arrays without large HBM copies."""
    assert targets.shape == outputs.shape, (targets.shape, outputs.shape)
    n = outputs.size
    itemsize = max(jnp.dtype(targets.dtype).itemsize,
                   jnp.dtype(outputs.dtype).itemsize)

    if n % _LANES == 0:
        shape2d = (n // _LANES, _LANES)                       # free bitcast
        t2, o2 = targets.reshape(shape2d), outputs.reshape(shape2d)
    elif (outputs.ndim >= 1
          and _round_up(outputs.shape[-1], _LANES) * itemsize * _ROW_ALIGN
          <= _MAX_BLOCK_BYTES):
        c = outputs.shape[-1]
        t2, o2 = targets.reshape(-1, c), outputs.reshape(-1, c)  # free bitcast
    else:
        # TODO(synk): pathological shape (unaligned total AND huge last dim):
        # falls back to one extra HBM pass to lane-pad the flat streams.
        pad = _round_up(n, _LANES) - n
        t2 = jnp.pad(targets.reshape(-1), (0, pad)).reshape(-1, _LANES)
        o2 = jnp.pad(outputs.reshape(-1), (0, pad)).reshape(-1, _LANES)

    rows = t2.shape[0]
    if rows <= _MAX_CHUNK_ROWS and rows % _ROW_ALIGN != 0:
        # Tiny array: cheap row pad (zero rows contribute nothing to the SSE)
        # keeps the in-kernel fold on native (8, lane) sub-tiles.
        pad_rows = _round_up(rows, _ROW_ALIGN) - rows
        t2 = jnp.pad(t2, ((0, pad_rows), (0, 0)))
        o2 = jnp.pad(o2, ((0, pad_rows), (0, 0)))
    return t2, o2


@jax.jit
def _mse_loss(targets, outputs):
    n = outputs.size
    if n == 0:
        return jnp.float32(0.0)
    t2, o2 = _as_2d_views(targets, outputs)
    sse = _pallas_sse_2d(o2, t2)
    return sse / jnp.float32(n)


class MSELoss:
    """Concrete `Loss`: mean squared error between `outputs` and `targets`.

    Mirrors the abstract PyTorch interface:
        forward(inputs, targets, outputs, split) -> (loss, metrics_dict)
    `inputs` is accepted for interface parity but unused by MSE.
    """

    def forward(self, inputs, targets, outputs, split: str):
        loss = _mse_loss(targets, outputs)
        metrics = {f"loss_{split}": loss}
        return loss, metrics

    __call__ = forward


if __name__ == "__main__":
    key = jax.random.PRNGKey(0)
    k_in, k_tgt, k_out = jax.random.split(key, 3)

    # NCHW, PyTorch-style: batch=2, channels=4, spatial=16x16
    shape = (2, 4, 16, 16)
    inputs = jax.random.normal(k_in, shape, dtype=jnp.float32)
    targets = jax.random.normal(k_tgt, shape, dtype=jnp.float32)
    outputs = jax.random.normal(k_out, shape, dtype=jnp.float32)

    loss_mod = MSELoss()
    loss, metrics = loss_mod(inputs, targets, outputs, split="train")
    loss = jax.block_until_ready(loss)
    ref = jnp.mean((outputs - targets) ** 2)
    assert jnp.allclose(loss, ref, rtol=1e-5, atol=1e-5), (loss, ref)
    assert "loss_train" in metrics

    # Unaligned total size (not a multiple of 128): exercises the copy-free
    # (rows, last_dim) view plus in-kernel ragged-row masking (no jnp.pad).
    big = (3, 5, 61, 67)
    t2 = jax.random.normal(k_tgt, big, dtype=jnp.float32)
    o2 = jax.random.normal(k_out, big, dtype=jnp.float32)
    loss2, _ = loss_mod(None, t2, o2, split="val")
    loss2 = jax.block_until_ready(loss2)
    ref2 = jnp.mean((o2 - t2) ** 2)
    assert jnp.allclose(loss2, ref2, rtol=1e-5, atol=1e-5), (loss2, ref2)

    # Lane-aligned multi-block shape: exercises the chunked fori_loop body,
    # the 2-shard grid axis, and the masked ragged last block.
    mid = (4, 96, 520)
    t3 = jax.random.normal(k_tgt, mid, dtype=jnp.float32)
    o3 = jax.random.normal(k_out, mid, dtype=jnp.float32)
    loss3, _ = loss_mod(None, t3, o3, split="test")
    loss3 = jax.block_until_ready(loss3)
    ref3 = jnp.mean((o3 - t3) ** 2)
    assert jnp.allclose(loss3, ref3, rtol=1e-5, atol=1e-5), (loss3, ref3)

    print("KERNEL_OK")
</pallas_src>

<mosaic_0001>
module attributes {stable_mosaic.version = 11 : i64} {
  func.func @kernel(%arg0: i32, %arg1: i32, %arg2: memref<32x128xf32, #tpu.memory_space<vmem>>, %arg3: memref<32x128xf32, #tpu.memory_space<vmem>>, %arg4: memref<8x128xf32, #tpu.memory_space<vmem>>) attributes {dimension_semantics = [#tpu.dimension_semantics<parallel>, #tpu.dimension_semantics<arbitrary>], iteration_bounds = array<i64: 1, 1>, scalar_prefetch = 0 : i64, scratch_operands = 0 : i64, tpu.core_type = #tpu.core_type<tc>, window_params = [{transform_indices = @transform_0, window_bounds = array<i64: 32, 128>}, {transform_indices = @transform_1, window_bounds = array<i64: 32, 128>}, {transform_indices = @transform_2, window_bounds = array<i64: 8, 128>}]} {
    %c0_i32 = arith.constant 0 : i32
    %0 = arith.cmpi eq, %arg1, %c0_i32 : i32
    %1 = arith.extui %0 : i1 to i32
    %c0_i32_0 = arith.constant 0 : i32
    %2 = arith.cmpi ne, %1, %c0_i32_0 : i32
    scf.if %2 {
      %cst_8 = arith.constant 0.000000e+00 : f32
      %12 = vector.broadcast %cst_8 : f32 to vector<8x128xf32>
      %c0_9 = arith.constant 0 : index
      %c0_10 = arith.constant 0 : index
      %13 = vector.load %arg4[%c0_9, %c0_10] : memref<8x128xf32, #tpu.memory_space<vmem>>, vector<8x128xf32>
      tpu.vector_store %arg4[%c0_9, %c0_10], %12 {strides = array<i32>} : memref<8x128xf32, #tpu.memory_space<vmem>>, vector<8x128xf32>,
    } else {
    }
    %c0 = arith.constant 0 : index
    %c0_1 = arith.constant 0 : index
    %3 = vector.load %arg4[%c0, %c0_1] : memref<8x128xf32, #tpu.memory_space<vmem>>, vector<8x128xf32>
    %c0_2 = arith.constant 0 : index
    %c0_3 = arith.constant 0 : index
    %4 = vector.load %arg2[%c0_2, %c0_3] : memref<32x128xf32, #tpu.memory_space<vmem>>, vector<32x128xf32>
    %c0_4 = arith.constant 0 : index
    %c0_5 = arith.constant 0 : index
    %5 = vector.load %arg3[%c0_4, %c0_5] : memref<32x128xf32, #tpu.memory_space<vmem>>, vector<32x128xf32>
    %6 = arith.subf %4, %5 : vector<32x128xf32>
    %7 = arith.mulf %6, %6 : vector<32x128xf32>
    %8 = vector.shape_cast %7 : vector<32x128xf32> to vector<4x8x128xf32>
    %cst = arith.constant dense<0.000000e+00> : vector<8x128xf32>
    %9 = vector.multi_reduction <add>, %8, %cst [0] : vector<4x8x128xf32> to vector<8x128xf32>
    %10 = arith.addf %3, %9 : vector<8x128xf32>
    %c0_6 = arith.constant 0 : index
    %c0_7 = arith.constant 0 : index
    %11 = vector.load %arg4[%c0_6, %c0_7] : memref<8x128xf32, #tpu.memory_space<vmem>>, vector<8x128xf32>
    tpu.vector_store %arg4[%c0_6, %c0_7], %10 {strides = array<i32>} : memref<8x128xf32, #tpu.memory_space<vmem>>, vector<8x128xf32>,
    return
  }
  func.func @transform_0(%arg0: i32, %arg1: i32) -> (i32, i32) {
    %c1_i32 = arith.constant 1 : i32
    %0 = arith.muli %arg0, %c1_i32 : i32
    %1 = arith.addi %0, %arg1 : i32
    %c0_i32 = arith.constant 0 : i32
    %2 = arith.minsi %1, %c0_i32 : i32
    %c0_i32_0 = arith.constant 0 : i32
    %c0_i32_1 = arith.constant 0 : i32
    return %2, %c0_i32_0 : i32, i32
  }
  func.func @transform_1(%arg0: i32, %arg1: i32) -> (i32, i32) {
    %c1_i32 = arith.constant 1 : i32
    %0 = arith.muli %arg0, %c1_i32 : i32
    %1 = arith.addi %0, %arg1 : i32
    %c0_i32 = arith.constant 0 : i32
    %2 = arith.minsi %1, %c0_i32 : i32
    %c0_i32_0 = arith.constant 0 : i32
    %c0_i32_1 = arith.constant 0 : i32
    return %2, %c0_i32_0 : i32, i32
  }
  func.func @transform_2(%arg0: i32, %arg1: i32) -> (i32, i32) {
    %c0_i32 = arith.constant 0 : i32
    %c0_i32_0 = arith.constant 0 : i32
    return %arg0, %c0_i32 : i32, i32
  }
}

</mosaic_0001>

<llo_original>
// kernel: _mse_loss.1
$region0: #{_mse_loss.1}
  #allocation0 [shape = 'u32[]', space=smem, size = 0x4, offset = 0x4, fixed_abs, tag = 'smem constant byte address 0x4 - core index']
  #allocation1 [shape = 'u32[72,128]{1,0:T(1,128)}', space=vmem, size = 0x9000, scoped, tag = 'internal scratch']
  %s0 = inlined_call_operand.vmem [shape: f32[32,128], index: 0, kind: input, shape index: {}]
  %s1 = inlined_call_operand.vmem [shape: f32[32,128], index: 1, kind: input, shape index: {}]
  %s2 = inlined_call_operand.vmem [shape: f32[8,128], index: 2, kind: output, shape index: {}]
  %s3 = sld [smem:[#allocation0]]
  $region22: #{_mse_loss.1} parent=0
    _
  %s5 = ssub.s32 1, %s3
  %s6 = scalar_select 0, %s5, %s3
  // Predicated region
  $region2: #{_mse_loss.1} parent=0 // pred_check
    _
  $region3: #{_mse_loss.1} parent=0 // pred_check_branch
    %8 = sbr.rel (0) target = $region5
  $region4: #{_mse_loss.1} parent=0 // pred_region
    %s9 = sadd.s32 0, 0
    %p10 = scmp.lt.s32.totalorder %s9, 0
    %s11 = scalar_select %p10, %s9, 0
    %s12 = smul.u32 4, %s11
    %p13 = scmp.lt.s32.totalorder %s12, 3
    %s14 = scalar_select %p13, %s12, 3
    %s15 = smul.addr %s14, 8
    %s16 = scalar_lea.vmem %s0, %s15
    %s17 = sadd.s32 0, 0
    %p18 = scmp.lt.s32.totalorder %s17, 0
    %s19 = scalar_select %p18, %s17, 0
    %s20 = smul.u32 4, %s19
  $region5: #{_mse_loss.1} parent=0 // pred_fallthru
    _
  // Predicated region
  $region6: #{_mse_loss.1} parent=0 // pred_check
    _
  $region7: #{_mse_loss.1} parent=0 // pred_check_branch
    %22 = sbr.rel (0) target = $region9
  $region8: #{_mse_loss.1} parent=0 // pred_region
    %s23 = sadd.s32 0, 0
    %p24 = scmp.lt.s32.totalorder %s23, 0
    %s25 = scalar_select %p24, %s23, 0
    %s26 = smul.u32 4, %s25
    %p27 = scmp.lt.s32.totalorder %s26, 3
    %s28 = scalar_select %p27, %s26, 3
    %s29 = smul.addr %s28, 8
    %s30 = scalar_lea.vmem %s1, %s29
    %s31 = sadd.s32 0, 0
    %p32 = scmp.lt.s32.totalorder %s31, 0
    %s33 = scalar_select %p32, %s31, 0
    %s34 = smul.u32 4, %s33
  $region9: #{_mse_loss.1} parent=0 // pred_fallthru
    _
  %s35 = sadd.s32 0, 0
  %p36 = scmp.lt.s32.totalorder %s35, 0
  %s37 = scalar_select %p36, %s35, 0
  %s38 = smul.u32 4, %s37
  %p39 = scmp.lt.s32.totalorder %s38, 3
  %s40 = scalar_select %p39, %s38, 3
  %s41 = smul.addr %s40, 8
  %s42 = scalar_lea.vmem %s0, %s41
  %s43 = sadd.s32 0, 0
  %p44 = scmp.lt.s32.totalorder %s43, 0
  %s45 = scalar_select %p44, %s43, 0
  %s46 = smul.u32 4, %s45
  %p47 = scmp.lt.s32.totalorder %s46, 3
  %s48 = scalar_select %p47, %s46, 3
  %s49 = smul.addr %s48, 8
  %s50 = scalar_lea.vmem %s1, %s49
  %s51 = sadd.s32 0, 0
  %p52 = scmp.lt.s32.totalorder %s51, 0
  %s53 = scalar_select %p52, %s51, 0
  %s54 = smul.u32 4, %s53
  %p55 = scmp.lt.s32.totalorder %s54, 3
  %s56 = scalar_select %p55, %s54, 3
  %s57 = smul.addr %s56, 8
  %s58 = scalar_lea.vmem %s0, %s57
  %s59 = sadd.s32 0, 0
  %p60 = scmp.lt.s32.totalorder %s59, 0
  %s61 = scalar_select %p60, %s59, 0
  %s62 = smul.u32 4, %s61
  %s63 = sadd.s32 0, 0
  %p64 = scmp.lt.s32.totalorder %s63, 0
  %s65 = scalar_select %p64, %s63, 0
  %s66 = smul.u32 4, %s65
  %p67 = scmp.lt.s32.totalorder %s66, 3
  %s68 = scalar_select %p67, %s66, 3
  %s69 = smul.addr %s68, 8
  %s70 = scalar_lea.vmem %s1, %s69
  %s71 = sadd.s32 0, 0
  %p72 = scmp.lt.s32.totalorder %s71, 0
  %s73 = scalar_select %p72, %s71, 0
  %s74 = smul.u32 4, %s73
  %p75 = scmp.eq.s32.totalorder 0, 0
  // Predicated region
  $region10: #{_mse_loss.1} parent=0 // pred_check
    %p76 = pneg %p75
  $region11: #{_mse_loss.1} parent=0 // pred_check_branch
    %78 = sbr.rel (%p76) target = $region13
  $region12: #{_mse_loss.1} parent=0 // pred_region
    %79 = vst [vmem:[%s2] sm:$0xff] 0.0
  $region13: #{_mse_loss.1} parent=0 // pred_fallthru
    _
  %v80 = vld [vmem:[%s2] sm:$0xff]
  %v81 = vld [vmem:[%s58] sm:$0xff]
  %v82 = vld [vmem:[%s58 + $0x8] sm:$0xff]
  %v83 = vld [vmem:[%s58 + $0x10] sm:$0xff]
  %v84 = vld [vmem:[%s58 + $0x18] sm:$0xff]
  %v85 = vld [vmem:[%s70] sm:$0xff]
  %v86 = vld [vmem:[%s70 + $0x8] sm:$0xff]
  %v87 = vld [vmem:[%s70 + $0x10] sm:$0xff]
  %v88 = vld [vmem:[%s70 + $0x18] sm:$0xff]
  %v89 = vsub.f32 %v81, %v85
  %v90 = vsub.f32 %v82, %v86
  %v91 = vsub.f32 %v83, %v87
  %v92 = vsub.f32 %v84, %v88
  %v93 = vmul.f32 %v89, %v89
  %v94 = vmul.f32 %v90, %v90
  %v95 = vmul.f32 %v91, %v91
  %v96 = vmul.f32 %v92, %v92
  %v97 = vadd.f32 %v93, %v94
  %v98 = vadd.f32 %v97, %v95
  %v99 = vadd.f32 %v98, %v96
  %v100 = vadd.f32 %v80, %v99
  %101 = vst [vmem:[%s2] sm:$0xff] %v100
  // Predicated region
  $region14: #{_mse_loss.1} parent=0 // pred_check
    _
  $region15: #{_mse_loss.1} parent=0 // pred_check_branch
    %103 = sbr.rel (0) target = $region17
  $region16: #{_mse_loss.1} parent=0 // pred_region
    _
  $region17: #{_mse_loss.1} parent=0 // pred_fallthru
    _
  // Predicated region
  $region18: #{_mse_loss.1} parent=0 // pred_check
    _
  $region19: #{_mse_loss.1} parent=0 // pred_check_branch
    %105 = sbr.rel (0) target = $region21
  $region20: #{_mse_loss.1} parent=0 // pred_region
    _
  $region21: #{_mse_loss.1} parent=0 // pred_fallthru
    _

</llo_original>
